<compile_context>
chip_gen: v6e
topology: v6e:2x2x1
jax: 0.10.0
libtpu: 0.0.40
codegen_flags: <defaults>
</compile_context>

<pallas_src>
import functools

import jax
import jax.numpy as jnp
from jax.experimental import pallas as pl
from jax.experimental.pallas import tpu as pltpu


def _scse_kernel(x_ref, w1_ref, b1_ref, w2_ref, b2_ref, wsp_ref, bsp_ref,
                 o_ref, *, inv_hw, use_mxu_pool):
    x = x_ref[...]                                  # (bb, C, HW), source dtype
    bb, C, HW = x.shape

    # ---- cSE: global average pool over HW ----
    if use_mxu_pool:
        # One well-shaped (M=bb*C, K=HW, N=1) matmul on the otherwise-idle MXU,
        # f32 accumulation for free; reshape is free since C % 8 == 0.
        ones = jnp.ones((HW, 1), dtype=x.dtype)
        pooled = jnp.dot(x.reshape(bb * C, HW), ones,
                         preferred_element_type=jnp.float32)       # (bb*C, 1)
        y = pooled.reshape(bb, C) * inv_hw                         # (bb, C) f32
    else:
        # f32-accumulating lane reduce (no explicit full-tile astype).
        y = jnp.sum(x, axis=-1, dtype=jnp.float32) * inv_hw        # (bb, C) f32

    # Tiny excitation MLP on the VPU/XLU (broadcast-mul + small reduce);
    # no 1-wide MXU FIFO round-trips.
    h = jnp.sum(y[:, None, :] * w1_ref[...][None, :, :], axis=-1)  # (bb, hidden)
    h = jnp.maximum(h + b1_ref[...], 0.0)
    z = jnp.sum(h[:, None, :] * w2_ref[...][None, :, :], axis=-1)  # (bb, C)
    zc = jax.nn.sigmoid(z + b2_ref[...])                           # (bb, C) f32

    # ---- sSE: 1x1 conv (C -> 1) as full-tile vmul + sublane reduce (VPU/XLU) ----
    wsp = wsp_ref[...].astype(x.dtype)[None, :, :]                 # (1, C, 1)
    zs = jnp.sum(x * wsp, axis=1, dtype=jnp.float32)               # (bb, HW) f32
    zs = jax.nn.sigmoid(zs + bsp_ref[0, 0])                        # (bb, HW) f32

    # ---- scSE(x) = x * (zc + zs): one fused gate over the full tile ----
    gate = zc[:, :, None].astype(x.dtype) + zs[:, None, :].astype(x.dtype)
    o_ref[...] = (x * gate).astype(o_ref.dtype)


def _chip_config():
    """Returns (scoped-VMEM cap in bytes, number of TensorCores per chip)."""
    vmem_phys = 128 << 20           # v5e / v6e physical VMEM per TensorCore
    num_tc = 1
    try:
        kind = jax.devices()[0].device_kind.lower()
    except Exception:
        kind = ""
    if "v7" in kind:
        vmem_phys, num_tc = 64 << 20, 2
    try:  # prefer the real number when the query is available
        info = pltpu.get_tpu_info()
        vmem_phys = int(getattr(info, "vmem_capacity_bytes", vmem_phys))
    except Exception:
        pass
    # ~25% headroom for compiler-internal scratch.
    return (vmem_phys * 3) // 4, num_tc


def scse_ref(x, w1, b1, w2, b2, w_sp, b_sp):
    # Pure-JAX reference matching PyTorch semantics (NCHW).
    y = jnp.mean(x, axis=(2, 3))                                   # (B, C)
    h = jax.nn.relu(y @ w1.T + b1[:, 0])                           # (B, hidden)
    zc = jax.nn.sigmoid(h @ w2.T + b2[:, 0])                       # (B, C)
    zs = jax.nn.sigmoid(jnp.einsum('bchw,c->bhw', x, w_sp[0]) + b_sp[0, 0])
    return x * zc[:, :, None, None] + x * zs[:, None, :, :]


def scse_forward(x, w1, b1, w2, b2, w_sp, b_sp):
    B, C, H, W = x.shape
    HW = H * W
    hidden = w1.shape[0]

    vmem_cap, num_tc = _chip_config()
    itemsize = jnp.dtype(x.dtype).itemsize
    per_img = C * HW * itemsize

    # Live VMEM per grid step ~= double-buffered in + out blocks (4x block)
    # plus ~2 full-tile intermediates in x.dtype and small f32 state.
    LIVE_MULT = 8
    overhead = 4 << 20

    if LIVE_MULT * per_img + overhead > vmem_cap:
        # TODO(synk): add spatial (HW) tiling with a pooled-accumulator scratch
        # for very large images; until then fall back to pure JAX rather than
        # spill / fail VMEM allocation (matters first on v7x's 64 MiB).
        return scse_ref(x, w1, b1, w2, b2, w_sp, b_sp)

    # ---- batch block sizing (per generation) ----
    max_bb = max(1, (vmem_cap - overhead) // (LIVE_MULT * per_img))
    target_block = (4 << 20) if num_tc == 1 else (2 << 20)   # fatter on 1-TC chips
    min_block = 1 << 20                                      # don't go below ~1 MiB
    bb = max(1, min(target_block // per_img, max_bb))

    min_steps = 2 * num_tc            # >= 2 grid steps per TensorCore -> pipelined DMA
    if B >= min_steps:
        bb_steps = pl.cdiv(B, min_steps)
        if bb_steps * per_img >= min_block:
            bb = min(bb, bb_steps)
        else:
            bb = min(bb, max(bb_steps, pl.cdiv(min_block, per_img)))
    bb = int(max(1, min(bb, B)))
    grid = (pl.cdiv(B, bb),)

    block_bytes = bb * per_img
    vmem_limit = int(min(max(LIVE_MULT * block_bytes + overhead, 16 << 20),
                         vmem_cap))

    # Lane-dense view, no padding / no final slice: block (bb, C, HW) has its
    # last two dims equal to the full array dims, which is always legal.
    x3 = x.reshape(B, C, HW)

    kernel = functools.partial(_scse_kernel,
                               inv_hw=1.0 / float(HW),
                               use_mxu_pool=(C % 8 == 0))

    out = pl.pallas_call(
        kernel,
        out_shape=jax.ShapeDtypeStruct((B, C, HW), x.dtype),
        grid=grid,
        in_specs=[
            pl.BlockSpec((bb, C, HW), lambda i: (i, 0, 0)),      # x (batch block)
            pl.BlockSpec((hidden, C), lambda i: (0, 0)),         # fc1 weight
            pl.BlockSpec((1, hidden), lambda i: (0, 0)),         # fc1 bias
            pl.BlockSpec((C, hidden), lambda i: (0, 0)),         # fc2 weight
            pl.BlockSpec((1, C), lambda i: (0, 0)),              # fc2 bias
            pl.BlockSpec((C, 1), lambda i: (0, 0)),              # 1x1 conv weight (C on sublanes)
            pl.BlockSpec(memory_space=pltpu.MemorySpace.SMEM),   # 1x1 conv bias (scalar)
        ],
        out_specs=pl.BlockSpec((bb, C, HW), lambda i: (i, 0, 0)),
        compiler_params=pltpu.CompilerParams(
            dimension_semantics=("parallel",),
            vmem_limit_bytes=vmem_limit),
    )(x3, w1, b1.reshape(1, hidden), w2, b2.reshape(1, C),
      w_sp.reshape(C, 1), b_sp.reshape(1, 1))

    return out.reshape(B, C, H, W)


if __name__ == "__main__":
    # Small shapes consistent with the module: channel=32, ratio=16 -> hidden=2.
    B, C, H, W = 2, 32, 16, 16
    ratio = 16
    hidden = C // ratio

    key = jax.random.PRNGKey(0)
    k = jax.random.split(key, 8)
    x = jax.random.normal(k[0], (B, C, H, W), dtype=jnp.float32)

    # Deterministic parameter init (PyTorch-like uniform +/- 1/sqrt(fan_in)).
    def uinit(kk, shape, fan_in):
        bound = 1.0 / jnp.sqrt(fan_in)
        return jax.random.uniform(kk, shape, jnp.float32, -bound, bound)

    w1 = uinit(k[1], (hidden, C), C)          # Linear(C -> C//ratio)
    b1 = uinit(k[2], (hidden, 1), C)
    w2 = uinit(k[3], (C, hidden), hidden)     # Linear(C//ratio -> C)
    b2 = uinit(k[4], (C, 1), hidden)
    w_sp = uinit(k[5], (1, C), C)             # Conv2d(C -> 1, kernel 1x1) weight
    b_sp = uinit(k[6], (1, 1), C)             # Conv2d bias

    out = scse_forward(x, w1, b1, w2, b2, w_sp, b_sp)
    out = jax.block_until_ready(out)

    ref = scse_ref(x, w1, b1, w2, b2, w_sp, b_sp)
    assert out.shape == (B, C, H, W)
    assert jnp.allclose(out, ref, atol=1e-5, rtol=1e-5), "mismatch vs reference"

    print("KERNEL_OK")
</pallas_src>

<mosaic_0001>
module attributes {stable_mosaic.version = 11 : i64} {
  func.func @_scse_kernel(%arg0: i32, %arg1: memref<2x32x256xf32, #tpu.memory_space<vmem>>, %arg2: memref<2x32xf32, #tpu.memory_space<vmem>>, %arg3: memref<1x2xf32, #tpu.memory_space<vmem>>, %arg4: memref<32x2xf32, #tpu.memory_space<vmem>>, %arg5: memref<1x32xf32, #tpu.memory_space<vmem>>, %arg6: memref<32x1xf32, #tpu.memory_space<vmem>>, %arg7: memref<1x1xf32, #tpu.memory_space<smem>>, %arg8: memref<2x32x256xf32, #tpu.memory_space<vmem>>) attributes {dimension_semantics = [#tpu.dimension_semantics<parallel>], iteration_bounds = array<i64: 1>, scalar_prefetch = 0 : i64, scratch_operands = 0 : i64, tpu.core_type = #tpu.core_type<tc>, window_params = [{transform_indices = @transform_0, window_bounds = array<i64: 2, 32, 256>}, {pipeline_mode = #tpu.pipeline_mode<synchronous>, transform_indices = @transform_1, window_bounds = array<i64: 2, 32>}, {pipeline_mode = #tpu.pipeline_mode<synchronous>, transform_indices = @transform_2, window_bounds = array<i64: 1, 2>}, {pipeline_mode = #tpu.pipeline_mode<synchronous>, transform_indices = @transform_3, window_bounds = array<i64: 32, 2>}, {pipeline_mode = #tpu.pipeline_mode<synchronous>, transform_indices = @transform_4, window_bounds = array<i64: 1, 32>}, {pipeline_mode = #tpu.pipeline_mode<synchronous>, transform_indices = @transform_5, window_bounds = array<i64: 32, 1>}, {transform_indices = @transform_6, window_bounds = array<i64: 1, 1>}, {transform_indices = @transform_7, window_bounds = array<i64: 2, 32, 256>}]} {
    %c0 = arith.constant 0 : index
    %c0_0 = arith.constant 0 : index
    %c0_1 = arith.constant 0 : index
    %0 = vector.load %arg1[%c0, %c0_0, %c0_1] : memref<2x32x256xf32, #tpu.memory_space<vmem>>, vector<2x32x256xf32>
    %cst = arith.constant 1.000000e+00 : f32
    %1 = vector.broadcast %cst : f32 to vector<256x1xf32>
    %2 = vector.shape_cast %0 : vector<2x32x256xf32> to vector<64x256xf32>
    %cst_2 = arith.constant dense<0.000000e+00> : vector<64x1xf32>
    %3 = tpu.matmul %2, %1, %cst_2 {dimension_numbers = #tpu.dot_dimension_numbers<[1], [0], [0], [1], [0, 0, 1, 1], [], []>} : vector<64x256xf32>, vector<256x1xf32>, vector<64x1xf32> -> vector<64x1xf32>
    %4 = vector.shape_cast %3 : vector<64x1xf32> to vector<2x32xf32>
    %cst_3 = arith.constant 3.906250e-03 : f32
    %5 = vector.broadcast %cst_3 : f32 to vector<2x32xf32>
    %6 = arith.mulf %4, %5 : vector<2x32xf32>
    %7 = vector.shape_cast %6 : vector<2x32xf32> to vector<2x1x32xf32>
    %c0_4 = arith.constant 0 : index
    %c0_5 = arith.constant 0 : index
    %8 = vector.load %arg2[%c0_4, %c0_5] : memref<2x32xf32, #tpu.memory_space<vmem>>, vector<2x32xf32>
    %9 = vector.shape_cast %8 : vector<2x32xf32> to vector<1x2x32xf32>
    %10 = vector.broadcast %7 : vector<2x1x32xf32> to vector<2x2x32xf32>
    %11 = vector.broadcast %9 : vector<1x2x32xf32> to vector<2x2x32xf32>
    %12 = arith.mulf %10, %11 : vector<2x2x32xf32>
    %cst_6 = arith.constant dense<0.000000e+00> : vector<2x2xf32>
    %13 = vector.multi_reduction <add>, %12, %cst_6 [2] : vector<2x2x32xf32> to vector<2x2xf32>
    %c0_7 = arith.constant 0 : index
    %c0_8 = arith.constant 0 : index
    %14 = vector.load %arg3[%c0_7, %c0_8] : memref<1x2xf32, #tpu.memory_space<vmem>>, vector<1x2xf32>
    %15 = vector.broadcast %14 : vector<1x2xf32> to vector<2x2xf32>
    %16 = arith.addf %13, %15 : vector<2x2xf32>
    %cst_9 = arith.constant 0.000000e+00 : f32
    %17 = vector.broadcast %cst_9 : f32 to vector<2x2xf32>
    %18 = arith.maximumf %16, %17 : vector<2x2xf32>
    %19 = vector.shape_cast %18 : vector<2x2xf32> to vector<2x1x2xf32>
    %c0_10 = arith.constant 0 : index
    %c0_11 = arith.constant 0 : index
    %20 = vector.load %arg4[%c0_10, %c0_11] : memref<32x2xf32, #tpu.memory_space<vmem>>, vector<32x2xf32>
    %21 = vector.shape_cast %20 : vector<32x2xf32> to vector<1x32x2xf32>
    %22 = vector.broadcast %19 : vector<2x1x2xf32> to vector<2x32x2xf32>
    %23 = vector.broadcast %21 : vector<1x32x2xf32> to vector<2x32x2xf32>
    %24 = arith.mulf %22, %23 : vector<2x32x2xf32>
    %cst_12 = arith.constant dense<0.000000e+00> : vector<2x32xf32>
    %25 = vector.multi_reduction <add>, %24, %cst_12 [2] : vector<2x32x2xf32> to vector<2x32xf32>
    %c0_13 = arith.constant 0 : index
    %c0_14 = arith.constant 0 : index
    %26 = vector.load %arg5[%c0_13, %c0_14] : memref<1x32xf32, #tpu.memory_space<vmem>>, vector<1x32xf32>
    %27 = vector.broadcast %26 : vector<1x32xf32> to vector<2x32xf32>
    %28 = arith.addf %25, %27 : vector<2x32xf32>
    %29 = arith.negf %28 : vector<2x32xf32>
    %30 = math.exp %29 : vector<2x32xf32>
    %cst_15 = arith.constant 1.000000e+00 : f32
    %31 = vector.broadcast %cst_15 : f32 to vector<2x32xf32>
    %32 = arith.addf %31, %30 : vector<2x32xf32>
    %33 = arith.divf %31, %32 : vector<2x32xf32>
    %c0_16 = arith.constant 0 : index
    %c0_17 = arith.constant 0 : index
    %34 = vector.load %arg6[%c0_16, %c0_17] : memref<32x1xf32, #tpu.memory_space<vmem>>, vector<32x1xf32>
    %35 = vector.shape_cast %34 : vector<32x1xf32> to vector<1x32x1xf32>
    %36 = vector.broadcast %35 : vector<1x32x1xf32> to vector<2x32x256xf32>
    %37 = arith.mulf %0, %36 : vector<2x32x256xf32>
    %cst_18 = arith.constant dense<0.000000e+00> : vector<2x256xf32>
    %38 = vector.multi_reduction <add>, %37, %cst_18 [1] : vector<2x32x256xf32> to vector<2x256xf32>
    %c0_19 = arith.constant 0 : index
    %c0_20 = arith.constant 0 : index
    %39 = memref.load %arg7[%c0_19, %c0_20] : memref<1x1xf32, #tpu.memory_space<smem>>
    %40 = vector.broadcast %39 : f32 to vector<2x256xf32>
    %41 = arith.addf %38, %40 : vector<2x256xf32>
    %42 = arith.negf %41 : vector<2x256xf32>
    %43 = math.exp %42 : vector<2x256xf32>
    %cst_21 = arith.constant 1.000000e+00 : f32
    %44 = vector.broadcast %cst_21 : f32 to vector<2x256xf32>
    %45 = arith.addf %44, %43 : vector<2x256xf32>
    %46 = arith.divf %44, %45 : vector<2x256xf32>
    %47 = vector.shape_cast %33 : vector<2x32xf32> to vector<2x32x1xf32>
    %48 = vector.shape_cast %46 : vector<2x256xf32> to vector<2x1x256xf32>
    %49 = vector.broadcast %47 : vector<2x32x1xf32> to vector<2x32x256xf32>
    %50 = vector.broadcast %48 : vector<2x1x256xf32> to vector<2x32x256xf32>
    %51 = arith.addf %49, %50 : vector<2x32x256xf32>
    %52 = arith.mulf %0, %51 : vector<2x32x256xf32>
    %c0_22 = arith.constant 0 : index
    %c0_23 = arith.constant 0 : index
    %c0_24 = arith.constant 0 : index
    %53 = vector.load %arg8[%c0_22, %c0_23, %c0_24] : memref<2x32x256xf32, #tpu.memory_space<vmem>>, vector<2x32x256xf32>
    tpu.vector_store %arg8[%c0_22, %c0_23, %c0_24], %52 {strides = array<i32>} : memref<2x32x256xf32, #tpu.memory_space<vmem>>, vector<2x32x256xf32>,
    return
  }
  func.func @transform_0(%arg0: i32) -> (i32, i32, i32) {
    %c0_i32 = arith.constant 0 : i32
    %c0_i32_0 = arith.constant 0 : i32
    %c0_i32_1 = arith.constant 0 : i32
    return %arg0, %c0_i32, %c0_i32_0 : i32, i32, i32
  }
  func.func @transform_1(%arg0: i32) -> (i32, i32) {
    %c0_i32 = arith.constant 0 : i32
    %c0_i32_0 = arith.constant 0 : i32
    %c0_i32_1 = arith.constant 0 : i32
    return %c0_i32, %c0_i32_0 : i32, i32
  }
  func.func @transform_2(%arg0: i32) -> (i32, i32) {
    %c0_i32 = arith.constant 0 : i32
    %c0_i32_0 = arith.constant 0 : i32
    %c0_i32_1 = arith.constant 0 : i32
    return %c0_i32, %c0_i32_0 : i32, i32
  }
  func.func @transform_3(%arg0: i32) -> (i32, i32) {
    %c0_i32 = arith.constant 0 : i32
    %c0_i32_0 = arith.constant 0 : i32
    %c0_i32_1 = arith.constant 0 : i32
    return %c0_i32, %c0_i32_0 : i32, i32
  }
  func.func @transform_4(%arg0: i32) -> (i32, i32) {
    %c0_i32 = arith.constant 0 : i32
    %c0_i32_0 = arith.constant 0 : i32
    %c0_i32_1 = arith.constant 0 : i32
    return %c0_i32, %c0_i32_0 : i32, i32
  }
  func.func @transform_5(%arg0: i32) -> (i32, i32) {
    %c0_i32 = arith.constant 0 : i32
    %c0_i32_0 = arith.constant 0 : i32
    %c0_i32_1 = arith.constant 0 : i32
    return %c0_i32, %c0_i32_0 : i32, i32
  }
  func.func @transform_6(%arg0: i32) -> (i32, i32) {
    %c0_i32 = arith.constant 0 : i32
    %c0_i32_0 = arith.constant 0 : i32
    %c0_i32_1 = arith.constant 0 : i32
    return %c0_i32, %c0_i32_0 : i32, i32
  }
  func.func @transform_7(%arg0: i32) -> (i32, i32, i32) {
    %c0_i32 = arith.constant 0 : i32
    %c0_i32_0 = arith.constant 0 : i32
    %c0_i32_1 = arith.constant 0 : i32
    return %arg0, %c0_i32, %c0_i32_0 : i32, i32, i32
  }
}

</mosaic_0001>

<llo_original>
// kernel: tpu_custom_call.1
$region0: #{tpu_custom_call.1}
  #allocation0 [shape = 'u32[]', space=smem, size = 0x4, offset = 0x4, fixed_abs, tag = 'smem constant byte address 0x4 - core index']
  #allocation1 [shape = 'u32[144,128]{1,0:T(1,128)}', space=vmem, size = 0x12000, scoped, tag = 'internal scratch']
  #allocation2 [shape = 'f32[1,1]{1,0:T(1,128)S(6)}', space=smem, size = 0x200, scoped, tag = 'scoped memory for tpu_custom_call.1']
  %s0 = inlined_call_operand.hbm [shape: f32[2,32,256], index: 0, kind: input, shape index: {}]
  %s1 = inlined_call_operand.vmem [shape: f32[2,32], index: 1, kind: input, shape index: {}]
  %s2 = inlined_call_operand.vmem [shape: f32[1,2], index: 2, kind: input, shape index: {}]
  %s3 = inlined_call_operand.vmem [shape: f32[32,2], index: 3, kind: input, shape index: {}]
  %s4 = inlined_call_operand.vmem [shape: f32[1,32], index: 4, kind: input, shape index: {}]
  %s5 = inlined_call_operand.vmem [shape: f32[32,1], index: 5, kind: input, shape index: {}]
  %s6 = inlined_call_operand.<no memory space> [shape: f32[1,1], index: 6, kind: input, shape index: {}]
  %s7 = inlined_call_operand.hbm [shape: f32[2,32,256], index: 7, kind: output, shape index: {}]
  %s8 = sld [smem:[#allocation0]]
  $region42: #{tpu_custom_call.1} parent=0
    _
  %s10 = ssub.s32 1, %s8
  %s11 = scalar_select 0, %s10, %s8
  %12 = sst [smem:[#allocation2]] %s6
  $region1: #{tpu_custom_call.1} parent=0
    #allocation3 [shape = 'u8[65536]{0}', space=vmem, size = 0x10000, scoped, tag = 'input window, operand 0, single buffered']
    #allocation4 [shape = 's32[1]{0}', space=sflag, size = 0x4, scoped, tag = 'scoped memory for tpu_custom_call.1']
    #allocation5 [shape = 's32[1]{0}', space=sflag, size = 0x4, scoped, tag = 'scoped memory for tpu_custom_call.1']
    #allocation6 [shape = 'u8[65536]{0}', space=vmem, size = 0x10000, scoped, tag = 'output window, operand 0, single buffered']
    %13 = vsyncpa [#allocation4], 0
    %14 = vsyncpa [#allocation5], 0
    // Predicated region
    $region2: #{tpu_custom_call.1} parent=1 // pred_check
      _
    $region3: #{tpu_custom_call.1} parent=1 // pred_check_branch
      %16 = sbr.rel (0) target = $region5
    $region4: #{tpu_custom_call.1} parent=1 // pred_region
      %s18 = ssub.s32 2048, 2048
      %19 = vsyncadd [#allocation4], %s18
      %s20 = sshll.u32 [#allocation3], 4
      %s21 = int_to_ptr.vmem [resolvable:$true] %s20
      %26 = dma.hbm_to_vmem [thread:$0]  %s0, 2048, %s21, [#allocation4], 256, 256, 16
    $region5: #{tpu_custom_call.1} parent=1 // pred_fallthru
      _
    // Predicated region
    $region6: #{tpu_custom_call.1} parent=1 // pred_check
      _
    $region7: #{tpu_custom_call.1} parent=1 // pred_check_branch
      %28 = sbr.rel (0) target = $region9
    $region8: #{tpu_custom_call.1} parent=1 // pred_region
      _
    $region9: #{tpu_custom_call.1} parent=1 // pred_fallthru
      _
    // Predicated region
    $region10: #{tpu_custom_call.1} parent=1 // pred_check
      _
    $region11: #{tpu_custom_call.1} parent=1 // pred_check_branch
      %30 = sbr.rel (0) target = $region13
    $region12: #{tpu_custom_call.1} parent=1 // pred_region
      _
    $region13: #{tpu_custom_call.1} parent=1 // pred_fallthru
      _
    // Predicated region
    $region14: #{tpu_custom_call.1} parent=1 // pred_check
      _
    $region15: #{tpu_custom_call.1} parent=1 // pred_check_branch
      %32 = sbr.rel (0) target = $region17
    $region16: #{tpu_custom_call.1} parent=1 // pred_region
      _
    $region17: #{tpu_custom_call.1} parent=1 // pred_fallthru
      _
    // Predicated region
    $region18: #{tpu_custom_call.1} parent=1 // pred_check
      _
    $region19: #{tpu_custom_call.1} parent=1 // pred_check_branch
      %34 = sbr.rel (0) target = $region21
    $region20: #{tpu_custom_call.1} parent=1 // pred_region
      _
    $region21: #{tpu_custom_call.1} parent=1 // pred_fallthru
      _
    // Predicated region
    $region22: #{tpu_custom_call.1} parent=1 // pred_check
      _
    $region23: #{tpu_custom_call.1} parent=1 // pred_check_branch
      %36 = sbr.rel (0) target = $region25
    $region24: #{tpu_custom_call.1} parent=1 // pred_region
      _
    $region25: #{tpu_custom_call.1} parent=1 // pred_fallthru
      _
    // Predicated region
    $region26: #{tpu_custom_call.1} parent=1 // pred_check
      _
    $region27: #{tpu_custom_call.1} parent=1 // pred_check_branch
      %38 = sbr.rel (0) target = $region29
    $region28: #{tpu_custom_call.1} parent=1 // pred_region
      _
    $region29: #{tpu_custom_call.1} parent=1 // pred_fallthru
      _
    // Predicated region
    $region30: #{tpu_custom_call.1} parent=1 // pred_check
      _
    $region31: #{tpu_custom_call.1} parent=1 // pred_check_branch
      %40 = sbr.rel (0) target = $region33
    $region32: #{tpu_custom_call.1} parent=1 // pred_region
      %41 = dma.done [#allocation4], 2048
    $region33: #{tpu_custom_call.1} parent=1 // pred_fallthru
      _
    %v42 = vld [vmem:[#allocation3] sm:$0xff]
    %v43 = vld [vmem:[#allocation3 + $0x8] sm:$0xff]
    %v44 = vld [vmem:[#allocation3 + $0x10] sm:$0xff]
    %v45 = vld [vmem:[#allocation3 + $0x18] sm:$0xff]
    %v46 = vld [vmem:[#allocation3 + $0x20] sm:$0xff]
    %v47 = vld [vmem:[#allocation3 + $0x28] sm:$0xff]
    %v48 = vld [vmem:[#allocation3 + $0x30] sm:$0xff]
    %v49 = vld [vmem:[#allocation3 + $0x38] sm:$0xff]
    %v50 = vld [vmem:[#allocation3 + $0x40] sm:$0xff]
    %v51 = vld [vmem:[#allocation3 + $0x48] sm:$0xff]
    %v52 = vld [vmem:[#allocation3 + $0x50] sm:$0xff]
    %v53 = vld [vmem:[#allocation3 + $0x58] sm:$0xff]
    %v54 = vld [vmem:[#allocation3 + $0x60] sm:$0xff]
    %v55 = vld [vmem:[#allocation3 + $0x68] sm:$0xff]
    %v56 = vld [vmem:[#allocation3 + $0x70] sm:$0xff]
    %v57 = vld [vmem:[#allocation3 + $0x78] sm:$0xff]
    %58 = vmatprep.subr.mxu0 0.0
    %59 = vmatpush1.msra.mxu0 1.0
    %60 = vmatprep.subr.mxu0 0.0
    %61 = vmatpush1.msra.mxu0 1.0
    %62 = vmatprep.subr.mxu0 0.0
    %63 = vmatpush1.msra.mxu0 1.0
    %64 = vmatprep.subr.mxu0 0.0
    %65 = vmatpush1.msra.mxu0 1.0
    %66 = vmatprep.subr.mxu0 0.0
    %67 = vmatpush1.msra.mxu0 1.0
    %68 = vmatprep.subr.mxu0 0.0
    %69 = vmatpush1.msra.mxu0 1.0
    %70 = vmatprep.subr.mxu0 0.0
    %71 = vmatpush1.msra.mxu0 1.0
    %72 = vmatprep.subr.mxu0 0.0
    %73 = vmatpush1.msra.mxu0 1.0
    %74 = vmatprep.subr.mxu0 0.0
    %75 = vmatpush1.msra.mxu0 1.0
    %76 = vmatprep.subr.mxu0 0.0
    %77 = vmatpush1.msra.mxu0 1.0
    %78 = vmatprep.subr.mxu0 0.0
    %79 = vmatpush1.msra.mxu0 1.0
    %80 = vmatprep.subr.mxu0 0.0
    %81 = vmatpush1.msra.mxu0 1.0
    %82 = vmatprep.subr.mxu0 0.0
    %83 = vmatpush1.msra.mxu0 1.0
    %84 = vmatprep.subr.mxu0 0.0
    %85 = vmatpush1.msra.mxu0 1.0
    %86 = vmatprep.subr.mxu0 0.0
    %87 = vmatpush1.msra.mxu0 1.0
    %88 = vmatprep.subr.mxu0 0.0
    %89 = vmatpush1.msra.mxu0 1.0
    %90 = vmatprep.subr.mxu0 0.0
    %91 = vmatpush2.msra.mxu0 1.0
    %92 = vmatprep.subr.mxu0 0.0
    %93 = vmatpush2.msra.mxu0 1.0
    %94 = vmatprep.subr.mxu0 0.0
    %95 = vmatpush2.msra.mxu0 1.0
    %96 = vmatprep.subr.mxu0 0.0
    %97 = vmatpush2.msra.mxu0 1.0
    %98 = vmatprep.subr.mxu0 0.0
    %99 = vmatpush2.msra.mxu0 1.0
    %100 = vmatprep.subr.mxu0 0.0
    %101 = vmatpush2.msra.mxu0 1.0
    %102 = vmatprep.subr.mxu0 0.0
    %103 = vmatpush2.msra.mxu0 1.0
    %104 = vmatprep.subr.mxu0 0.0
    %105 = vmatpush2.msra.mxu0 1.0
    %106 = vmatprep.subr.mxu0 0.0
    %107 = vmatpush2.msra.mxu0 1.0
    %108 = vmatprep.subr.mxu0 0.0
    %109 = vmatpush2.msra.mxu0 1.0
    %110 = vmatprep.subr.mxu0 0.0
    %111 = vmatpush2.msra.mxu0 1.0
    %112 = vmatprep.subr.mxu0 0.0
    %113 = vmatpush2.msra.mxu0 1.0
    %114 = vmatprep.subr.mxu0 0.0
    %115 = vmatpush2.msra.mxu0 1.0
    %116 = vmatprep.subr.mxu0 0.0
    %117 = vmatpush2.msra.mxu0 1.0
    %118 = vmatprep.subr.mxu0 0.0
    %119 = vmatpush2.msra.mxu0 1.0
    %120 = vmatprep.subr.mxu0 0.0
    %121 = vmatpush2.msra.mxu0 1.0
    %122 = vmatprep.mubr.f32.mxu0 %v43
    %123 = vmatmul.mubr.f32.gmra.mxu0 %v42
    %v124 = vpop.f32.mrf.mxu0
    %v125 = vadd.f32 0.0, %v124
    %v126 = vpop.f32.mrf.mxu0
    %127 = vmatprep.mubr.f32.mxu0 %v45
    %128 = vmatmul.mubr.f32.gmra.mxu0 %v44
    %v129 = vpop.f32.mrf.mxu0
    %v130 = vadd.f32 0.0, %v129
    %v131 = vpop.f32.mrf.mxu0
    %132 = vmatprep.mubr.f32.mxu0 %v47
    %133 = vmatmul.mubr.f32.gmra.mxu0 %v46
    %v134 = vpop.f32.mrf.mxu0
    %v135 = vadd.f32 0.0, %v134
    %v136 = vpop.f32.mrf.mxu0
    %137 = vmatprep.mubr.f32.mxu0 %v49
    %138 = vmatmul.mubr.f32.gmra.mxu0 %v48
    %v139 = vpop.f32.mrf.mxu0
    %v140 = vadd.f32 0.0, %v139
    %v141 = vpop.f32.mrf.mxu0
    %142 = vmatprep.mubr.f32.mxu0 %v51
    %143 = vmatmul.mubr.f32.gmra.mxu0 %v50
    %v144 = vpop.f32.mrf.mxu0
    %v145 = vadd.f32 0.0, %v144
    %v146 = vpop.f32.mrf.mxu0
    %147 = vmatprep.mubr.f32.mxu0 %v53
    %148 = vmatmul.mubr.f32.gmra.mxu0 %v52
    %v149 = vpop.f32.mrf.mxu0
    %v150 = vadd.f32 0.0, %v149
    %v151 = vpop.f32.mrf.mxu0
    %152 = vmatprep.mubr.f32.mxu0 %v55
    %153 = vmatmul.mubr.f32.gmra.mxu0 %v54
    %v154 = vpop.f32.mrf.mxu0
    %v155 = vadd.f32 0.0, %v154
    %v156 = vpop.f32.mrf.mxu0
    %157 = vmatprep.mubr.f32.mxu0 %v57
    %158 = vmatmul.mubr.f32.gmra.mxu0 %v56
    %v159 = vpop.f32.mrf.mxu0
    %v160 = vadd.f32 0.0, %v159
    %v161 = vpop.f32.mrf.mxu0
    %162 = vdwg.mxu0
    %v163 = vmul.f32 %v125, 0.00390625
    %v164 = vmul.f32 %v130, 0.00390625
    %v165 = vmul.f32 %v135, 0.00390625
    %v166 = vmul.f32 %v140, 0.00390625
    %v167 = vmul.f32 %v145, 0.00390625
    %v168 = vmul.f32 %v150, 0.00390625
    %v169 = vmul.f32 %v155, 0.00390625
    %v170 = vmul.f32 %v160, 0.00390625
    %v171 = vld [vmem:[%s1] sm:$0x3]
    %v173 = vlaneseq
    %v174 = vshrl.u32 %v173, 7
    %v175 = vsub.s32 0, %v174
    %v176 = vrot.slane %v171, %v175
    %178 = vbcast.lane.b32.xlu0 %v176, 256
    %v179 = vpop.permute.xlu0 %178
    %s181 = sor.u32 256, 8
    %182 = vbcast.lane.b32.xlu0 %v176, %s181
    %v183 = vpop.permute.xlu0 %182
    %s185 = sor.u32 256, 16
    %186 = vbcast.lane.b32.xlu0 %v176, %s185
    %v187 = vpop.permute.xlu0 %186
    %s189 = sor.u32 256, 24
    %190 = vbcast.lane.b32.xlu0 %v176, %s189
    %v191 = vpop.permute.xlu0 %190
    %v192 = vlaneseq
    %v193 = vshrl.u32 %v192, 7
    %v194 = vsub.s32 1, %v193
    %v195 = vrot.slane %v171, %v194
    %197 = vbcast.lane.b32.xlu0 %v195, 256
    %v198 = vpop.permute.xlu0 %197
    %s200 = sor.u32 256, 8
    %201 = vbcast.lane.b32.xlu0 %v195, %s200
    %v202 = vpop.permute.xlu0 %201
    %s204 = sor.u32 256, 16
    %205 = vbcast.lane.b32.xlu0 %v195, %s204
    %v206 = vpop.permute.xlu0 %205
    %s208 = sor.u32 256, 24
    %209 = vbcast.lane.b32.xlu0 %v195, %s208
    %v210 = vpop.permute.xlu0 %209
    %v219 = vmul.f32 %v163, %v179
    %v220 = vmul.f32 %v164, %v183
    %v221 = vmul.f32 %v165, %v187
    %v222 = vmul.f32 %v166, %v191
    %v223 = vmul.f32 %v163, %v198
    %v224 = vmul.f32 %v164, %v202
    %v225 = vmul.f32 %v165, %v206
    %v226 = vmul.f32 %v166, %v210
    %v227 = vmul.f32 %v167, %v179
    %v228 = vmul.f32 %v168, %v183
    %v229 = vmul.f32 %v169, %v187
    %v230 = vmul.f32 %v170, %v191
    %v231 = vmul.f32 %v167, %v198
    %v232 = vmul.f32 %v168, %v202
    %v233 = vmul.f32 %v169, %v206
    %v234 = vmul.f32 %v170, %v210
    %251 = vset.pattern.permute.xlu0 0
    %252 = vperm.xlu0 %251, %v219
    %v253 = vpop.permute.xlu0 %252
    %254 = vset.pattern.permute.xlu0 0
    %255 = vperm.xlu0 %254, %v220
    %v256 = vpop.permute.xlu0 %255
    %257 = vset.pattern.permute.xlu0 0
    %258 = vperm.xlu0 %257, %v221
    %v259 = vpop.permute.xlu0 %258
    %260 = vset.pattern.permute.xlu0 0
    %261 = vperm.xlu0 %260, %v222
    %v262 = vpop.permute.xlu0 %261
    %263 = vset.pattern.permute.xlu0 0
    %264 = vperm.xlu0 %263, %v223
    %v265 = vpop.permute.xlu0 %264
    %266 = vset.pattern.permute.xlu0 0
    %267 = vperm.xlu0 %266, %v224
    %v268 = vpop.permute.xlu0 %267
    %269 = vset.pattern.permute.xlu0 0
    %270 = vperm.xlu0 %269, %v225
    %v271 = vpop.permute.xlu0 %270
    %272 = vset.pattern.permute.xlu0 0
    %273 = vperm.xlu0 %272, %v226
    %v274 = vpop.permute.xlu0 %273
    %275 = vset.pattern.permute.xlu0 0
    %276 = vperm.xlu0 %275, %v227
    %v277 = vpop.permute.xlu0 %276
    %278 = vset.pattern.permute.xlu0 0
    %279 = vperm.xlu0 %278, %v228
    %v280 = vpop.permute.xlu0 %279
    %281 = vset.pattern.permute.xlu0 0
    %282 = vperm.xlu0 %281, %v229
    %v283 = vpop.permute.xlu0 %282
    %284 = vset.pattern.permute.xlu0 0
    %285 = vperm.xlu0 %284, %v230
    %v286 = vpop.permute.xlu0 %285
    %287 = vset.pattern.permute.xlu0 0
    %288 = vperm.xlu0 %287, %v231
    %v289 = vpop.permute.xlu0 %288
    %290 = vset.pattern.permute.xlu0 0
    %291 = vperm.xlu0 %290, %v232
    %v292 = vpop.permute.xlu0 %291
    %293 = vset.pattern.permute.xlu0 0
    %294 = vperm.xlu0 %293, %v233
    %v295 = vpop.permute.xlu0 %294
    %296 = vset.pattern.permute.xlu0 0
    %297 = vperm.xlu0 %296, %v234
    %v298 = vpop.permute.xlu0 %297
    %v299 = vlaneseq
    %v300 = vand.u32 %v299, 127
    %v301 = vlaneseq
    %v302 = vshrl.u32 %v301, 7
    %v303 = vsub.s32 %v300, %v302
    %v304 = vrot.slane %v253, %v303
    %v305 = vadd.s32 %v300, 4294967288
    %v306 = vlaneseq
    %v307 = vshrl.u32 %v306, 7
    %v308 = vsub.s32 %v305, %v307
    %v309 = vrot.slane %v256, %v308
    %vm310 = vcmask 130112
    %v311 = vsel %vm310, %v309, %v304
    %v312 = vadd.s32 %v300, 4294967280
    %v313 = vlaneseq
    %v314 = vshrl.u32 %v313, 7
    %v315 = vsub.s32 %v312, %v314
    %v316 = vrot.slane %v259, %v315
    %vm317 = vcmask 195712
    %v318 = vsel %vm317, %v316, %v311
    %v319 = vadd.s32 %v300, 4294967272
    %v320 = vlaneseq
    %v321 = vshrl.u32 %v320, 7
    %v322 = vsub.s32 %v319, %v321
    %v323 = vrot.slane %v262, %v322
    %vm324 = vcmask 261312
    %v325 = vsel %vm324, %v323, %v318
    %v326 = vlaneseq
    %v327 = vshrl.u32 %v326, 7
    %v328 = vsub.s32 %v300, %v327
    %v329 = vrot.slane %v265, %v328
    %v330 = vlaneseq
    %v331 = vshrl.u32 %v330, 7
    %v332 = vsub.s32 %v305, %v331
    %v333 = vrot.slane %v268, %v332
    %v334 = vsel %vm310, %v333, %v329
    %v335 = vlaneseq
    %v336 = vshrl.u32 %v335, 7
    %v337 = vsub.s32 %v312, %v336
    %v338 = vrot.slane %v271, %v337
    %v339 = vsel %vm317, %v338, %v334
    %v340 = vlaneseq
    %v341 = vshrl.u32 %v340, 7
    %v342 = vsub.s32 %v319, %v341
    %v343 = vrot.slane %v274, %v342
    %v344 = vsel %vm324, %v343, %v339
    %v345 = vlaneseq
    %v346 = vshrl.u32 %v345, 7
    %v347 = vsub.s32 %v300, %v346
    %v348 = vrot.slane %v277, %v347
    %v349 = vlaneseq
    %v350 = vshrl.u32 %v349, 7
    %v351 = vsub.s32 %v305, %v350
    %v352 = vrot.slane %v280, %v351
    %v353 = vsel %vm310, %v352, %v348
    %v354 = vlaneseq
    %v355 = vshrl.u32 %v354, 7
    %v356 = vsub.s32 %v312, %v355
    %v357 = vrot.slane %v283, %v356
    %v358 = vsel %vm317, %v357, %v353
    %v359 = vlaneseq
    %v360 = vshrl.u32 %v359, 7
    %v361 = vsub.s32 %v319, %v360
    %v362 = vrot.slane %v286, %v361
    %v363 = vsel %vm324, %v362, %v358
    %v364 = vlaneseq
    %v365 = vshrl.u32 %v364, 7
    %v366 = vsub.s32 %v300, %v365
    %v367 = vrot.slane %v289, %v366
    %v368 = vlaneseq
    %v369 = vshrl.u32 %v368, 7
    %v370 = vsub.s32 %v305, %v369
    %v371 = vrot.slane %v292, %v370
    %v372 = vsel %vm310, %v371, %v367
    %v373 = vlaneseq
    %v374 = vshrl.u32 %v373, 7
    %v375 = vsub.s32 %v312, %v374
    %v376 = vrot.slane %v295, %v375
    %v377 = vsel %vm317, %v376, %v372
    %v378 = vlaneseq
    %v379 = vshrl.u32 %v378, 7
    %v380 = vsub.s32 %v319, %v379
    %v381 = vrot.slane %v298, %v380
    %v382 = vsel %vm324, %v381, %v377
    %vm383 = vcmask 1041409
    %v384 = vsel %vm383, %v344, %v325
    %v385 = vsel %vm383, %v382, %v363
    %vm388 = vcmask 254976
    %v389 = vsel %vm388, %v384, 0.0
    %390 = vadd.xlane.f32.xlu0 %v389
    %v391 = vpop.xlane.xlu0 %390
    %v392 = vsel %vm388, %v385, 0.0
    %393 = vadd.xlane.f32.xlu0 %v392
    %v394 = vpop.xlane.xlu0 %393
    %v395 = vld [vmem:[%s2] sm:$0x1]
    %v397 = vlaneseq
    %v398 = vshrl.u32 %v397, 7
    %v399 = vsub.s32 0, %v398
    %v400 = vrot.slane %v395, %v399
    %402 = vbcast.lane.b32.xlu0 %v400, 256
    %v403 = vpop.permute.xlu0 %402
    %v405 = vadd.f32 %v391, %v403
    %v406 = vadd.f32 %v394, %v403
    %v407 = vmax.f32 %v405, 0.0
    %v408 = vmax.f32 %v406, 0.0
    %v409 = vld [vmem:[%s3] sm:$0xff]
    %v410 = vld [vmem:[%s3 + $0x8] sm:$0xff]
    %v411 = vld [vmem:[%s3 + $0x10] sm:$0xff]
    %v412 = vld [vmem:[%s3 + $0x18] sm:$0xff]
    %v417 = vlaneseq
    %v418 = vshrl.u32 %v417, 7
    %v419 = vsub.s32 0, %v418
    %v420 = vrot.slane %v409, %v419
    %422 = vbcast.lane.b32.xlu0 %v420, 256
    %v423 = vpop.permute.xlu0 %422
    %v424 = vlaneseq
    %v425 = vshrl.u32 %v424, 7
    %v426 = vsub.s32 1, %v425
    %v427 = vrot.slane %v409, %v426
    %429 = vbcast.lane.b32.xlu0 %v427, 256
    %v430 = vpop.permute.xlu0 %429
    %v431 = vlaneseq
    %v432 = vshrl.u32 %v431, 7
    %v433 = vsub.s32 2, %v432
    %v434 = vrot.slane %v409, %v433
    %436 = vbcast.lane.b32.xlu0 %v434, 256
    %v437 = vpop.permute.xlu0 %436
    %v438 = vlaneseq
    %v439 = vshrl.u32 %v438, 7
    %v440 = vsub.s32 3, %v439
    %v441 = vrot.slane %v409, %v440
    %443 = vbcast.lane.b32.xlu0 %v441, 256
    %v444 = vpop.permute.xlu0 %443
    %v445 = vlaneseq
    %v446 = vshrl.u32 %v445, 7
    %v447 = vsub.s32 4, %v446
    %v448 = vrot.slane %v409, %v447
    %450 = vbcast.lane.b32.xlu0 %v448, 256
    %v451 = vpop.permute.xlu0 %450
    %v452 = vlaneseq
    %v453 = vshrl.u32 %v452, 7
    %v454 = vsub.s32 5, %v453
    %v455 = vrot.slane %v409, %v454
    %457 = vbcast.lane.b32.xlu0 %v455, 256
    %v458 = vpop.permute.xlu0 %457
    %v459 = vlaneseq
    %v460 = vshrl.u32 %v459, 7
    %v461 = vsub.s32 6, %v460
    %v462 = vrot.slane %v409, %v461
    %464 = vbcast.lane.b32.xlu0 %v462, 256
    %v465 = vpop.permute.xlu0 %464
    %v466 = vlaneseq
    %v467 = vshrl.u32 %v466, 7
    %v468 = vsub.s32 7, %v467
    %v469 = vrot.slane %v409, %v468
    %471 = vbcast.lane.b32.xlu0 %v469, 256
    %v472 = vpop.permute.xlu0 %471
    %v473 = vlaneseq
    %v474 = vshrl.u32 %v473, 7
    %v475 = vsub.s32 0, %v474
    %v476 = vrot.slane %v410, %v475
    %478 = vbcast.lane.b32.xlu0 %v476, 256
    %v479 = vpop.permute.xlu0 %478
    %v480 = vlaneseq
    %v481 = vshrl.u32 %v480, 7
    %v482 = vsub.s32 1, %v481
    %v483 = vrot.slane %v410, %v482
    %485 = vbcast.lane.b32.xlu0 %v483, 256
    %v486 = vpop.permute.xlu0 %485
    %v487 = vlaneseq
    %v488 = vshrl.u32 %v487, 7
    %v489 = vsub.s32 2, %v488
    %v490 = vrot.slane %v410, %v489
    %492 = vbcast.lane.b32.xlu0 %v490, 256
    %v493 = vpop.permute.xlu0 %492
    %v494 = vlaneseq
    %v495 = vshrl.u32 %v494, 7
    %v496 = vsub.s32 3, %v495
    %v497 = vrot.slane %v410, %v496
    %499 = vbcast.lane.b32.xlu0 %v497, 256
    %v500 = vpop.permute.xlu0 %499
    %v501 = vlaneseq
    %v502 = vshrl.u32 %v501, 7
    %v503 = vsub.s32 4, %v502
    %v504 = vrot.slane %v410, %v503
    %506 = vbcast.lane.b32.xlu0 %v504, 256
    %v507 = vpop.permute.xlu0 %506
    %v508 = vlaneseq
    %v509 = vshrl.u32 %v508, 7
    %v510 = vsub.s32 5, %v509
    %v511 = vrot.slane %v410, %v510
    %513 = vbcast.lane.b32.xlu0 %v511, 256
    %v514 = vpop.permute.xlu0 %513
    %v515 = vlaneseq
    %v516 = vshrl.u32 %v515, 7
    %v517 = vsub.s32 6, %v516
    %v518 = vrot.slane %v410, %v517
    %520 = vbcast.lane.b32.xlu0 %v518, 256
    %v521 = vpop.permute.xlu0 %520
    %v522 = vlaneseq
    %v523 = vshrl.u32 %v522, 7
    %v524 = vsub.s32 7, %v523
    %v525 = vrot.slane %v410, %v524
    %527 = vbcast.lane.b32.xlu0 %v525, 256
    %v528 = vpop.permute.xlu0 %527
    %v529 = vlaneseq
    %v530 = vshrl.u32 %v529, 7
    %v531 = vsub.s32 0, %v530
    %v532 = vrot.slane %v411, %v531
    %534 = vbcast.lane.b32.xlu0 %v532, 256
    %v535 = vpop.permute.xlu0 %534
    %v536 = vlaneseq
    %v537 = vshrl.u32 %v536, 7
    %v538 = vsub.s32 1, %v537
    %v539 = vrot.slane %v411, %v538
    %541 = vbcast.lane.b32.xlu0 %v539, 256
    %v542 = vpop.permute.xlu0 %541
    %v543 = vlaneseq
    %v544 = vshrl.u32 %v543, 7
    %v545 = vsub.s32 2, %v544
    %v546 = vrot.slane %v411, %v545
    %548 = vbcast.lane.b32.xlu0 %v546, 256
    %v549 = vpop.permute.xlu0 %548
    %v550 = vlaneseq
    %v551 = vshrl.u32 %v550, 7
    %v552 = vsub.s32 3, %v551
    %v553 = vrot.slane %v411, %v552
    %555 = vbcast.lane.b32.xlu0 %v553, 256
    %v556 = vpop.permute.xlu0 %555
    %v557 = vlaneseq
    %v558 = vshrl.u32 %v557, 7
    %v559 = vsub.s32 4, %v558
    %v560 = vrot.slane %v411, %v559
    %562 = vbcast.lane.b32.xlu0 %v560, 256
    %v563 = vpop.permute.xlu0 %562
    %v564 = vlaneseq
    %v565 = vshrl.u32 %v564, 7
    %v566 = vsub.s32 5, %v565
    %v567 = vrot.slane %v411, %v566
    %569 = vbcast.lane.b32.xlu0 %v567, 256
    %v570 = vpop.permute.xlu0 %569
    %v571 = vlaneseq
    %v572 = vshrl.u32 %v571, 7
    %v573 = vsub.s32 6, %v572
    %v574 = vrot.slane %v411, %v573
    %576 = vbcast.lane.b32.xlu0 %v574, 256
    %v577 = vpop.permute.xlu0 %576
    %v578 = vlaneseq
    %v579 = vshrl.u32 %v578, 7
    %v580 = vsub.s32 7, %v579
    %v581 = vrot.slane %v411, %v580
    %583 = vbcast.lane.b32.xlu0 %v581, 256
    %v584 = vpop.permute.xlu0 %583
    %v585 = vlaneseq
    %v586 = vshrl.u32 %v585, 7
    %v587 = vsub.s32 0, %v586
    %v588 = vrot.slane %v412, %v587
    %590 = vbcast.lane.b32.xlu0 %v588, 256
    %v591 = vpop.permute.xlu0 %590
    %v592 = vlaneseq
    %v593 = vshrl.u32 %v592, 7
    %v594 = vsub.s32 1, %v593
    %v595 = vrot.slane %v412, %v594
    %597 = vbcast.lane.b32.xlu0 %v595, 256
    %v598 = vpop.permute.xlu0 %597
    %v599 = vlaneseq
    %v600 = vshrl.u32 %v599, 7
    %v601 = vsub.s32 2, %v600
    %v602 = vrot.slane %v412, %v601
    %604 = vbcast.lane.b32.xlu0 %v602, 256
    %v605 = vpop.permute.xlu0 %604
    %v606 = vlaneseq
    %v607 = vshrl.u32 %v606, 7
    %v608 = vsub.s32 3, %v607
    %v609 = vrot.slane %v412, %v608
    %611 = vbcast.lane.b32.xlu0 %v609, 256
    %v612 = vpop.permute.xlu0 %611
    %v613 = vlaneseq
    %v614 = vshrl.u32 %v613, 7
    %v615 = vsub.s32 4, %v614
    %v616 = vrot.slane %v412, %v615
    %618 = vbcast.lane.b32.xlu0 %v616, 256
    %v619 = vpop.permute.xlu0 %618
    %v620 = vlaneseq
    %v621 = vshrl.u32 %v620, 7
    %v622 = vsub.s32 5, %v621
    %v623 = vrot.slane %v412, %v622
    %625 = vbcast.lane.b32.xlu0 %v623, 256
    %v626 = vpop.permute.xlu0 %625
    %v627 = vlaneseq
    %v628 = vshrl.u32 %v627, 7
    %v629 = vsub.s32 6, %v628
    %v630 = vrot.slane %v412, %v629
    %632 = vbcast.lane.b32.xlu0 %v630, 256
    %v633 = vpop.permute.xlu0 %632
    %v634 = vlaneseq
    %v635 = vshrl.u32 %v634, 7
    %v636 = vsub.s32 7, %v635
    %v637 = vrot.slane %v412, %v636
    %639 = vbcast.lane.b32.xlu0 %v637, 256
    %v640 = vpop.permute.xlu0 %639
    %v673 = vmul.f32 %v407, %v423
    %v674 = vmul.f32 %v407, %v430
    %v675 = vmul.f32 %v407, %v437
    %v676 = vmul.f32 %v407, %v444
    %v677 = vmul.f32 %v407, %v451
    %v678 = vmul.f32 %v407, %v458
    %v679 = vmul.f32 %v407, %v465
    %v680 = vmul.f32 %v407, %v472
    %v681 = vmul.f32 %v407, %v479
    %v682 = vmul.f32 %v407, %v486
    %v683 = vmul.f32 %v407, %v493
    %v684 = vmul.f32 %v407, %v500
    %v685 = vmul.f32 %v407, %v507
    %v686 = vmul.f32 %v407, %v514
    %v687 = vmul.f32 %v407, %v521
    %v688 = vmul.f32 %v407, %v528
    %v689 = vmul.f32 %v407, %v535
    %v690 = vmul.f32 %v407, %v542
    %v691 = vmul.f32 %v407, %v549
    %v692 = vmul.f32 %v407, %v556
    %v693 = vmul.f32 %v407, %v563
    %v694 = vmul.f32 %v407, %v570
    %v695 = vmul.f32 %v407, %v577
    %v696 = vmul.f32 %v407, %v584
    %v697 = vmul.f32 %v407, %v591
    %v698 = vmul.f32 %v407, %v598
    %v699 = vmul.f32 %v407, %v605
    %v700 = vmul.f32 %v407, %v612
    %v701 = vmul.f32 %v407, %v619
    %v702 = vmul.f32 %v407, %v626
    %v703 = vmul.f32 %v407, %v633
    %v704 = vmul.f32 %v407, %v640
    %v705 = vmul.f32 %v408, %v423
    %v706 = vmul.f32 %v408, %v430
    %v707 = vmul.f32 %v408, %v437
    %v708 = vmul.f32 %v408, %v444
    %v709 = vmul.f32 %v408, %v451
    %v710 = vmul.f32 %v408, %v458
    %v711 = vmul.f32 %v408, %v465
    %v712 = vmul.f32 %v408, %v472
    %v713 = vmul.f32 %v408, %v479
    %v714 = vmul.f32 %v408, %v486
    %v715 = vmul.f32 %v408, %v493
    %v716 = vmul.f32 %v408, %v500
    %v717 = vmul.f32 %v408, %v507
    %v718 = vmul.f32 %v408, %v514
    %v719 = vmul.f32 %v408, %v521
    %v720 = vmul.f32 %v408, %v528
    %v721 = vmul.f32 %v408, %v535
    %v722 = vmul.f32 %v408, %v542
    %v723 = vmul.f32 %v408, %v549
    %v724 = vmul.f32 %v408, %v556
    %v725 = vmul.f32 %v408, %v563
    %v726 = vmul.f32 %v408, %v570
    %v727 = vmul.f32 %v408, %v577
    %v728 = vmul.f32 %v408, %v584
    %v729 = vmul.f32 %v408, %v591
    %v730 = vmul.f32 %v408, %v598
    %v731 = vmul.f32 %v408, %v605
    %v732 = vmul.f32 %v408, %v612
    %v733 = vmul.f32 %v408, %v619
    %v734 = vmul.f32 %v408, %v626
    %v735 = vmul.f32 %v408, %v633
    %v736 = vmul.f32 %v408, %v640
    %801 = vset.pattern.permute.xlu0 0
    %802 = vperm.xlu0 %801, %v673
    %v803 = vpop.permute.xlu0 %802
    %804 = vset.pattern.permute.xlu0 0
    %805 = vperm.xlu0 %804, %v674
    %v806 = vpop.permute.xlu0 %805
    %807 = vset.pattern.permute.xlu0 0
    %808 = vperm.xlu0 %807, %v675
    %v809 = vpop.permute.xlu0 %808
    %810 = vset.pattern.permute.xlu0 0
    %811 = vperm.xlu0 %810, %v676
    %v812 = vpop.permute.xlu0 %811
    %813 = vset.pattern.permute.xlu0 0
    %814 = vperm.xlu0 %813, %v677
    %v815 = vpop.permute.xlu0 %814
    %816 = vset.pattern.permute.xlu0 0
    %817 = vperm.xlu0 %816, %v678
    %v818 = vpop.permute.xlu0 %817
    %819 = vset.pattern.permute.xlu0 0
    %820 = vperm.xlu0 %819, %v679
    %v821 = vpop.permute.xlu0 %820
    %822 = vset.pattern.permute.xlu0 0
    %823 = vperm.xlu0 %822, %v680
    %v824 = vpop.permute.xlu0 %823
    %825 = vset.pattern.permute.xlu0 0
    %826 = vperm.xlu0 %825, %v681
    %v827 = vpop.permute.xlu0 %826
    %828 = vset.pattern.permute.xlu0 0
    %829 = vperm.xlu0 %828, %v682
    %v830 = vpop.permute.xlu0 %829
    %831 = vset.pattern.permute.xlu0 0
    %832 = vperm.xlu0 %831, %v683
    %v833 = vpop.permute.xlu0 %832
    %834 = vset.pattern.permute.xlu0 0
    %835 = vperm.xlu0 %834, %v684
    %v836 = vpop.permute.xlu0 %835
    %837 = vset.pattern.permute.xlu0 0
    %838 = vperm.xlu0 %837, %v685
    %v839 = vpop.permute.xlu0 %838
    %840 = vset.pattern.permute.xlu0 0
    %841 = vperm.xlu0 %840, %v686
    %v842 = vpop.permute.xlu0 %841
    %843 = vset.pattern.permute.xlu0 0
    %844 = vperm.xlu0 %843, %v687
    %v845 = vpop.permute.xlu0 %844
    %846 = vset.pattern.permute.xlu0 0
    %847 = vperm.xlu0 %846, %v688
    %v848 = vpop.permute.xlu0 %847
    %849 = vset.pattern.permute.xlu0 0
    %850 = vperm.xlu0 %849, %v689
    %v851 = vpop.permute.xlu0 %850
    %852 = vset.pattern.permute.xlu0 0
    %853 = vperm.xlu0 %852, %v690
    %v854 = vpop.permute.xlu0 %853
    %855 = vset.pattern.permute.xlu0 0
    %856 = vperm.xlu0 %855, %v691
    %v857 = vpop.permute.xlu0 %856
    %858 = vset.pattern.permute.xlu0 0
    %859 = vperm.xlu0 %858, %v692
    %v860 = vpop.permute.xlu0 %859
    %861 = vset.pattern.permute.xlu0 0
    %862 = vperm.xlu0 %861, %v693
    %v863 = vpop.permute.xlu0 %862
    %864 = vset.pattern.permute.xlu0 0
    %865 = vperm.xlu0 %864, %v694
    %v866 = vpop.permute.xlu0 %865
    %867 = vset.pattern.permute.xlu0 0
    %868 = vperm.xlu0 %867, %v695
    %v869 = vpop.permute.xlu0 %868
    %870 = vset.pattern.permute.xlu0 0
    %871 = vperm.xlu0 %870, %v696
    %v872 = vpop.permute.xlu0 %871
    %873 = vset.pattern.permute.xlu0 0
    %874 = vperm.xlu0 %873, %v697
    %v875 = vpop.permute.xlu0 %874
    %876 = vset.pattern.permute.xlu0 0
    %877 = vperm.xlu0 %876, %v698
    %v878 = vpop.permute.xlu0 %877
    %879 = vset.pattern.permute.xlu0 0
    %880 = vperm.xlu0 %879, %v699
    %v881 = vpop.permute.xlu0 %880
    %882 = vset.pattern.permute.xlu0 0
    %883 = vperm.xlu0 %882, %v700
    %v884 = vpop.permute.xlu0 %883
    %885 = vset.pattern.permute.xlu0 0
    %886 = vperm.xlu0 %885, %v701
    %v887 = vpop.permute.xlu0 %886
    %888 = vset.pattern.permute.xlu0 0
    %889 = vperm.xlu0 %888, %v702
    %v890 = vpop.permute.xlu0 %889
    %891 = vset.pattern.permute.xlu0 0
    %892 = vperm.xlu0 %891, %v703
    %v893 = vpop.permute.xlu0 %892
    %894 = vset.pattern.permute.xlu0 0
    %895 = vperm.xlu0 %894, %v704
    %v896 = vpop.permute.xlu0 %895
    %897 = vset.pattern.permute.xlu0 0
    %898 = vperm.xlu0 %897, %v705
    %v899 = vpop.permute.xlu0 %898
    %900 = vset.pattern.permute.xlu0 0
    %901 = vperm.xlu0 %900, %v706
    %v902 = vpop.permute.xlu0 %901
    %903 = vset.pattern.permute.xlu0 0
    %904 = vperm.xlu0 %903, %v707
    %v905 = vpop.permute.xlu0 %904
    %906 = vset.pattern.permute.xlu0 0
    %907 = vperm.xlu0 %906, %v708
    %v908 = vpop.permute.xlu0 %907
    %909 = vset.pattern.permute.xlu0 0
    %910 = vperm.xlu0 %909, %v709
    %v911 = vpop.permute.xlu0 %910
    %912 = vset.pattern.permute.xlu0 0
    %913 = vperm.xlu0 %912, %v710
    %v914 = vpop.permute.xlu0 %913
    %915 = vset.pattern.permute.xlu0 0
    %916 = vperm.xlu0 %915, %v711
    %v917 = vpop.permute.xlu0 %916
    %918 = vset.pattern.permute.xlu0 0
    %919 = vperm.xlu0 %918, %v712
    %v920 = vpop.permute.xlu0 %919
    %921 = vset.pattern.permute.xlu0 0
    %922 = vperm.xlu0 %921, %v713
    %v923 = vpop.permute.xlu0 %922
    %924 = vset.pattern.permute.xlu0 0
    %925 = vperm.xlu0 %924, %v714
    %v926 = vpop.permute.xlu0 %925
    %927 = vset.pattern.permute.xlu0 0
    %928 = vperm.xlu0 %927, %v715
    %v929 = vpop.permute.xlu0 %928
    %930 = vset.pattern.permute.xlu0 0
    %931 = vperm.xlu0 %930, %v716
    %v932 = vpop.permute.xlu0 %931
    %933 = vset.pattern.permute.xlu0 0
    %934 = vperm.xlu0 %933, %v717
    %v935 = vpop.permute.xlu0 %934
    %936 = vset.pattern.permute.xlu0 0
    %937 = vperm.xlu0 %936, %v718
    %v938 = vpop.permute.xlu0 %937
    %939 = vset.pattern.permute.xlu0 0
    %940 = vperm.xlu0 %939, %v719
    %v941 = vpop.permute.xlu0 %940
    %942 = vset.pattern.permute.xlu0 0
    %943 = vperm.xlu0 %942, %v720
    %v944 = vpop.permute.xlu0 %943
    %945 = vset.pattern.permute.xlu0 0
    %946 = vperm.xlu0 %945, %v721
    %v947 = vpop.permute.xlu0 %946
    %948 = vset.pattern.permute.xlu0 0
    %949 = vperm.xlu0 %948, %v722
    %v950 = vpop.permute.xlu0 %949
    %951 = vset.pattern.permute.xlu0 0
    %952 = vperm.xlu0 %951, %v723
    %v953 = vpop.permute.xlu0 %952
    %954 = vset.pattern.permute.xlu0 0
    %955 = vperm.xlu0 %954, %v724
    %v956 = vpop.permute.xlu0 %955
    %957 = vset.pattern.permute.xlu0 0
    %958 = vperm.xlu0 %957, %v725
    %v959 = vpop.permute.xlu0 %958
    %960 = vset.pattern.permute.xlu0 0
    %961 = vperm.xlu0 %960, %v726
    %v962 = vpop.permute.xlu0 %961
    %963 = vset.pattern.permute.xlu0 0
    %964 = vperm.xlu0 %963, %v727
    %v965 = vpop.permute.xlu0 %964
    %966 = vset.pattern.permute.xlu0 0
    %967 = vperm.xlu0 %966, %v728
    %v968 = vpop.permute.xlu0 %967
    %969 = vset.pattern.permute.xlu0 0
    %970 = vperm.xlu0 %969, %v729
    %v971 = vpop.permute.xlu0 %970
    %972 = vset.pattern.permute.xlu0 0
    %973 = vperm.xlu0 %972, %v730
    %v974 = vpop.permute.xlu0 %973
    %975 = vset.pattern.permute.xlu0 0
    %976 = vperm.xlu0 %975, %v731
    %v977 = vpop.permute.xlu0 %976
    %978 = vset.pattern.permute.xlu0 0
    %979 = vperm.xlu0 %978, %v732
    %v980 = vpop.permute.xlu0 %979
    %981 = vset.pattern.permute.xlu0 0
    %982 = vperm.xlu0 %981, %v733
    %v983 = vpop.permute.xlu0 %982
    %984 = vset.pattern.permute.xlu0 0
    %985 = vperm.xlu0 %984, %v734
    %v986 = vpop.permute.xlu0 %985
    %987 = vset.pattern.permute.xlu0 0
    %988 = vperm.xlu0 %987, %v735
    %v989 = vpop.permute.xlu0 %988
    %990 = vset.pattern.permute.xlu0 0
    %991 = vperm.xlu0 %990, %v736
    %v992 = vpop.permute.xlu0 %991
    %v993 = vlaneseq
    %v994 = vshrl.u32 %v993, 7
    %v995 = vsub.s32 %v300, %v994
    %v996 = vrot.slane %v803, %v995
    %v997 = vlaneseq
    %v998 = vshrl.u32 %v997, 7
    %v999 = vsub.s32 %v300, %v998
    %v1000 = vrot.slane %v806, %v999
    %v1001 = vlaneseq
    %v1002 = vshrl.u32 %v1001, 7
    %v1003 = vsub.s32 %v300, %v1002
    %v1004 = vrot.slane %v809, %v1003
    %v1005 = vlaneseq
    %v1006 = vshrl.u32 %v1005, 7
    %v1007 = vsub.s32 %v300, %v1006
    %v1008 = vrot.slane %v812, %v1007
    %v1009 = vlaneseq
    %v1010 = vshrl.u32 %v1009, 7
    %v1011 = vsub.s32 %v300, %v1010
    %v1012 = vrot.slane %v815, %v1011
    %v1013 = vlaneseq
    %v1014 = vshrl.u32 %v1013, 7
    %v1015 = vsub.s32 %v300, %v1014
    %v1016 = vrot.slane %v818, %v1015
    %v1017 = vlaneseq
    %v1018 = vshrl.u32 %v1017, 7
    %v1019 = vsub.s32 %v300, %v1018
    %v1020 = vrot.slane %v821, %v1019
    %v1021 = vlaneseq
    %v1022 = vshrl.u32 %v1021, 7
    %v1023 = vsub.s32 %v300, %v1022
    %v1024 = vrot.slane %v824, %v1023
    %v1025 = vlaneseq
    %v1026 = vshrl.u32 %v1025, 7
    %v1027 = vsub.s32 %v300, %v1026
    %v1028 = vrot.slane %v827, %v1027
    %v1029 = vlaneseq
    %v1030 = vshrl.u32 %v1029, 7
    %v1031 = vsub.s32 %v300, %v1030
    %v1032 = vrot.slane %v830, %v1031
    %v1033 = vlaneseq
    %v1034 = vshrl.u32 %v1033, 7
    %v1035 = vsub.s32 %v300, %v1034
    %v1036 = vrot.slane %v833, %v1035
    %v1037 = vlaneseq
    %v1038 = vshrl.u32 %v1037, 7
    %v1039 = vsub.s32 %v300, %v1038
    %v1040 = vrot.slane %v836, %v1039
    %v1041 = vlaneseq
    %v1042 = vshrl.u32 %v1041, 7
    %v1043 = vsub.s32 %v300, %v1042
    %v1044 = vrot.slane %v839, %v1043
    %v1045 = vlaneseq
    %v1046 = vshrl.u32 %v1045, 7
    %v1047 = vsub.s32 %v300, %v1046
    %v1048 = vrot.slane %v842, %v1047
    %v1049 = vlaneseq
    %v1050 = vshrl.u32 %v1049, 7
    %v1051 = vsub.s32 %v300, %v1050
    %v1052 = vrot.slane %v845, %v1051
    %v1053 = vlaneseq
    %v1054 = vshrl.u32 %v1053, 7
    %v1055 = vsub.s32 %v300, %v1054
    %v1056 = vrot.slane %v848, %v1055
    %v1057 = vlaneseq
    %v1058 = vshrl.u32 %v1057, 7
    %v1059 = vsub.s32 %v300, %v1058
    %v1060 = vrot.slane %v851, %v1059
    %v1061 = vlaneseq
    %v1062 = vshrl.u32 %v1061, 7
    %v1063 = vsub.s32 %v300, %v1062
    %v1064 = vrot.slane %v854, %v1063
    %v1065 = vlaneseq
    %v1066 = vshrl.u32 %v1065, 7
    %v1067 = vsub.s32 %v300, %v1066
    %v1068 = vrot.slane %v857, %v1067
    %v1069 = vlaneseq
    %v1070 = vshrl.u32 %v1069, 7
    %v1071 = vsub.s32 %v300, %v1070
    %v1072 = vrot.slane %v860, %v1071
    %v1073 = vlaneseq
    %v1074 = vshrl.u32 %v1073, 7
    %v1075 = vsub.s32 %v300, %v1074
    %v1076 = vrot.slane %v863, %v1075
    %v1077 = vlaneseq
    %v1078 = vshrl.u32 %v1077, 7
    %v1079 = vsub.s32 %v300, %v1078
    %v1080 = vrot.slane %v866, %v1079
    %v1081 = vlaneseq
    %v1082 = vshrl.u32 %v1081, 7
    %v1083 = vsub.s32 %v300, %v1082
    %v1084 = vrot.slane %v869, %v1083
    %v1085 = vlaneseq
    %v1086 = vshrl.u32 %v1085, 7
    %v1087 = vsub.s32 %v300, %v1086
    %v1088 = vrot.slane %v872, %v1087
    %v1089 = vlaneseq
    %v1090 = vshrl.u32 %v1089, 7
    %v1091 = vsub.s32 %v300, %v1090
    %v1092 = vrot.slane %v875, %v1091
    %v1093 = vlaneseq
    %v1094 = vshrl.u32 %v1093, 7
    %v1095 = vsub.s32 %v300, %v1094
    %v1096 = vrot.slane %v878, %v1095
    %v1097 = vlaneseq
    %v1098 = vshrl.u32 %v1097, 7
    %v1099 = vsub.s32 %v300, %v1098
    %v1100 = vrot.slane %v881, %v1099
    %v1101 = vlaneseq
    %v1102 = vshrl.u32 %v1101, 7
    %v1103 = vsub.s32 %v300, %v1102
    %v1104 = vrot.slane %v884, %v1103
    %v1105 = vlaneseq
    %v1106 = vshrl.u32 %v1105, 7
    %v1107 = vsub.s32 %v300, %v1106
    %v1108 = vrot.slane %v887, %v1107
    %v1109 = vlaneseq
    %v1110 = vshrl.u32 %v1109, 7
    %v1111 = vsub.s32 %v300, %v1110
    %v1112 = vrot.slane %v890, %v1111
    %v1113 = vlaneseq
    %v1114 = vshrl.u32 %v1113, 7
    %v1115 = vsub.s32 %v300, %v1114
    %v1116 = vrot.slane %v893, %v1115
    %v1117 = vlaneseq
    %v1118 = vshrl.u32 %v1117, 7
    %v1119 = vsub.s32 %v300, %v1118
    %v1120 = vrot.slane %v896, %v1119
    %v1121 = vlaneseq
    %v1122 = vshrl.u32 %v1121, 7
    %v1123 = vsub.s32 %v300, %v1122
    %v1124 = vrot.slane %v899, %v1123
    %v1125 = vlaneseq
    %v1126 = vshrl.u32 %v1125, 7
    %v1127 = vsub.s32 %v300, %v1126
    %v1128 = vrot.slane %v902, %v1127
    %v1129 = vlaneseq
    %v1130 = vshrl.u32 %v1129, 7
    %v1131 = vsub.s32 %v300, %v1130
    %v1132 = vrot.slane %v905, %v1131
    %v1133 = vlaneseq
    %v1134 = vshrl.u32 %v1133, 7
    %v1135 = vsub.s32 %v300, %v1134
    %v1136 = vrot.slane %v908, %v1135
    %v1137 = vlaneseq
    %v1138 = vshrl.u32 %v1137, 7
    %v1139 = vsub.s32 %v300, %v1138
    %v1140 = vrot.slane %v911, %v1139
    %v1141 = vlaneseq
    %v1142 = vshrl.u32 %v1141, 7
    %v1143 = vsub.s32 %v300, %v1142
    %v1144 = vrot.slane %v914, %v1143
    %v1145 = vlaneseq
    %v1146 = vshrl.u32 %v1145, 7
    %v1147 = vsub.s32 %v300, %v1146
    %v1148 = vrot.slane %v917, %v1147
    %v1149 = vlaneseq
    %v1150 = vshrl.u32 %v1149, 7
    %v1151 = vsub.s32 %v300, %v1150
    %v1152 = vrot.slane %v920, %v1151
    %v1153 = vlaneseq
    %v1154 = vshrl.u32 %v1153, 7
    %v1155 = vsub.s32 %v300, %v1154
    %v1156 = vrot.slane %v923, %v1155
    %v1157 = vlaneseq
    %v1158 = vshrl.u32 %v1157, 7
    %v1159 = vsub.s32 %v300, %v1158
    %v1160 = vrot.slane %v926, %v1159
    %v1161 = vlaneseq
    %v1162 = vshrl.u32 %v1161, 7
    %v1163 = vsub.s32 %v300, %v1162
    %v1164 = vrot.slane %v929, %v1163
    %v1165 = vlaneseq
    %v1166 = vshrl.u32 %v1165, 7
    %v1167 = vsub.s32 %v300, %v1166
    %v1168 = vrot.slane %v932, %v1167
    %v1169 = vlaneseq
    %v1170 = vshrl.u32 %v1169, 7
    %v1171 = vsub.s32 %v300, %v1170
    %v1172 = vrot.slane %v935, %v1171
    %v1173 = vlaneseq
    %v1174 = vshrl.u32 %v1173, 7
    %v1175 = vsub.s32 %v300, %v1174
    %v1176 = vrot.slane %v938, %v1175
    %v1177 = vlaneseq
    %v1178 = vshrl.u32 %v1177, 7
    %v1179 = vsub.s32 %v300, %v1178
    %v1180 = vrot.slane %v941, %v1179
    %v1181 = vlaneseq
    %v1182 = vshrl.u32 %v1181, 7
    %v1183 = vsub.s32 %v300, %v1182
    %v1184 = vrot.slane %v944, %v1183
    %v1185 = vlaneseq
    %v1186 = vshrl.u32 %v1185, 7
    %v1187 = vsub.s32 %v300, %v1186
    %v1188 = vrot.slane %v947, %v1187
    %v1189 = vlaneseq
    %v1190 = vshrl.u32 %v1189, 7
    %v1191 = vsub.s32 %v300, %v1190
    %v1192 = vrot.slane %v950, %v1191
    %v1193 = vlaneseq
    %v1194 = vshrl.u32 %v1193, 7
    %v1195 = vsub.s32 %v300, %v1194
    %v1196 = vrot.slane %v953, %v1195
    %v1197 = vlaneseq
    %v1198 = vshrl.u32 %v1197, 7
    %v1199 = vsub.s32 %v300, %v1198
    %v1200 = vrot.slane %v956, %v1199
    %v1201 = vlaneseq
    %v1202 = vshrl.u32 %v1201, 7
    %v1203 = vsub.s32 %v300, %v1202
    %v1204 = vrot.slane %v959, %v1203
    %v1205 = vlaneseq
    %v1206 = vshrl.u32 %v1205, 7
    %v1207 = vsub.s32 %v300, %v1206
    %v1208 = vrot.slane %v962, %v1207
    %v1209 = vlaneseq
    %v1210 = vshrl.u32 %v1209, 7
    %v1211 = vsub.s32 %v300, %v1210
    %v1212 = vrot.slane %v965, %v1211
    %v1213 = vlaneseq
    %v1214 = vshrl.u32 %v1213, 7
    %v1215 = vsub.s32 %v300, %v1214
    %v1216 = vrot.slane %v968, %v1215
    %v1217 = vlaneseq
    %v1218 = vshrl.u32 %v1217, 7
    %v1219 = vsub.s32 %v300, %v1218
    %v1220 = vrot.slane %v971, %v1219
    %v1221 = vlaneseq
    %v1222 = vshrl.u32 %v1221, 7
    %v1223 = vsub.s32 %v300, %v1222
    %v1224 = vrot.slane %v974, %v1223
    %v1225 = vlaneseq
    %v1226 = vshrl.u32 %v1225, 7
    %v1227 = vsub.s32 %v300, %v1226
    %v1228 = vrot.slane %v977, %v1227
    %v1229 = vlaneseq
    %v1230 = vshrl.u32 %v1229, 7
    %v1231 = vsub.s32 %v300, %v1230
    %v1232 = vrot.slane %v980, %v1231
    %v1233 = vlaneseq
    %v1234 = vshrl.u32 %v1233, 7
    %v1235 = vsub.s32 %v300, %v1234
    %v1236 = vrot.slane %v983, %v1235
    %v1237 = vlaneseq
    %v1238 = vshrl.u32 %v1237, 7
    %v1239 = vsub.s32 %v300, %v1238
    %v1240 = vrot.slane %v986, %v1239
    %v1241 = vlaneseq
    %v1242 = vshrl.u32 %v1241, 7
    %v1243 = vsub.s32 %v300, %v1242
    %v1244 = vrot.slane %v989, %v1243
    %v1245 = vlaneseq
    %v1246 = vshrl.u32 %v1245, 7
    %v1247 = vsub.s32 %v300, %v1246
    %v1248 = vrot.slane %v992, %v1247
    %v1249 = vsel %vm383, %v1000, %v996
    %vm1250 = vcmask 1042434
    %v1251 = vsel %vm1250, %v1004, %v1249
    %vm1252 = vcmask 1043459
    %v1253 = vsel %vm1252, %v1008, %v1251
    %vm1254 = vcmask 1044484
    %v1255 = vsel %vm1254, %v1012, %v1253
    %vm1256 = vcmask 1045509
    %v1257 = vsel %vm1256, %v1016, %v1255
    %vm1258 = vcmask 1046534
    %v1259 = vsel %vm1258, %v1020, %v1257
    %vm1260 = vcmask 1047559
    %v1261 = vsel %vm1260, %v1024, %v1259
    %v1262 = vsel %vm383, %v1032, %v1028
    %v1263 = vsel %vm1250, %v1036, %v1262
    %v1264 = vsel %vm1252, %v1040, %v1263
    %v1265 = vsel %vm1254, %v1044, %v1264
    %v1266 = vsel %vm1256, %v1048, %v1265
    %v1267 = vsel %vm1258, %v1052, %v1266
    %v1268 = vsel %vm1260, %v1056, %v1267
    %v1269 = vsel %vm383, %v1064, %v1060
    %v1270 = vsel %vm1250, %v1068, %v1269
    %v1271 = vsel %vm1252, %v1072, %v1270
    %v1272 = vsel %vm1254, %v1076, %v1271
    %v1273 = vsel %vm1256, %v1080, %v1272
    %v1274 = vsel %vm1258, %v1084, %v1273
    %v1275 = vsel %vm1260, %v1088, %v1274
    %v1276 = vsel %vm383, %v1096, %v1092
    %v1277 = vsel %vm1250, %v1100, %v1276
    %v1278 = vsel %vm1252, %v1104, %v1277
    %v1279 = vsel %vm1254, %v1108, %v1278
    %v1280 = vsel %vm1256, %v1112, %v1279
    %v1281 = vsel %vm1258, %v1116, %v1280
    %v1282 = vsel %vm1260, %v1120, %v1281
    %v1283 = vsel %vm383, %v1128, %v1124
    %v1284 = vsel %vm1250, %v1132, %v1283
    %v1285 = vsel %vm1252, %v1136, %v1284
    %v1286 = vsel %vm1254, %v1140, %v1285
    %v1287 = vsel %vm1256, %v1144, %v1286
    %v1288 = vsel %vm1258, %v1148, %v1287
    %v1289 = vsel %vm1260, %v1152, %v1288
    %v1290 = vsel %vm383, %v1160, %v1156
    %v1291 = vsel %vm1250, %v1164, %v1290
    %v1292 = vsel %vm1252, %v1168, %v1291
    %v1293 = vsel %vm1254, %v1172, %v1292
    %v1294 = vsel %vm1256, %v1176, %v1293
    %v1295 = vsel %vm1258, %v1180, %v1294
    %v1296 = vsel %vm1260, %v1184, %v1295
    %v1297 = vsel %vm383, %v1192, %v1188
    %v1298 = vsel %vm1250, %v1196, %v1297
    %v1299 = vsel %vm1252, %v1200, %v1298
    %v1300 = vsel %vm1254, %v1204, %v1299
    %v1301 = vsel %vm1256, %v1208, %v1300
    %v1302 = vsel %vm1258, %v1212, %v1301
    %v1303 = vsel %vm1260, %v1216, %v1302
    %v1304 = vsel %vm383, %v1224, %v1220
    %v1305 = vsel %vm1250, %v1228, %v1304
    %v1306 = vsel %vm1252, %v1232, %v1305
    %v1307 = vsel %vm1254, %v1236, %v1306
    %v1308 = vsel %vm1256, %v1240, %v1307
    %v1309 = vsel %vm1258, %v1244, %v1308
    %v1310 = vsel %vm1260, %v1248, %v1309
    %vm1319 = vcmask 15360
    %v1320 = vsel %vm1319, %v1261, 0.0
    %1321 = vadd.xlane.f32.xlu0 %v1320
    %v1322 = vpop.xlane.xlu0 %1321
    %v1323 = vsel %vm1319, %v1268, 0.0
    %1324 = vadd.xlane.f32.xlu0 %v1323
    %v1325 = vpop.xlane.xlu0 %1324
    %v1326 = vsel %vm1319, %v1275, 0.0
    %1327 = vadd.xlane.f32.xlu0 %v1326
    %v1328 = vpop.xlane.xlu0 %1327
    %v1329 = vsel %vm1319, %v1282, 0.0
    %1330 = vadd.xlane.f32.xlu0 %v1329
    %v1331 = vpop.xlane.xlu0 %1330
    %v1332 = vsel %vm1319, %v1289, 0.0
    %1333 = vadd.xlane.f32.xlu0 %v1332
    %v1334 = vpop.xlane.xlu0 %1333
    %v1335 = vsel %vm1319, %v1296, 0.0
    %1336 = vadd.xlane.f32.xlu0 %v1335
    %v1337 = vpop.xlane.xlu0 %1336
    %v1338 = vsel %vm1319, %v1303, 0.0
    %1339 = vadd.xlane.f32.xlu0 %v1338
    %v1340 = vpop.xlane.xlu0 %1339
    %v1341 = vsel %vm1319, %v1310, 0.0
    %1342 = vadd.xlane.f32.xlu0 %v1341
    %v1343 = vpop.xlane.xlu0 %1342
    %v1344 = vld [vmem:[%s4] sm:$0x1]
    %v1346 = vlaneseq
    %v1347 = vshrl.u32 %v1346, 7
    %v1348 = vsub.s32 0, %v1347
    %v1349 = vrot.slane %v1344, %v1348
    %1351 = vbcast.lane.b32.xlu0 %v1349, 256
    %v1352 = vpop.permute.xlu0 %1351
    %s1354 = sor.u32 256, 8
    %1355 = vbcast.lane.b32.xlu0 %v1349, %s1354
    %v1356 = vpop.permute.xlu0 %1355
    %s1358 = sor.u32 256, 16
    %1359 = vbcast.lane.b32.xlu0 %v1349, %s1358
    %v1360 = vpop.permute.xlu0 %1359
    %s1362 = sor.u32 256, 24
    %1363 = vbcast.lane.b32.xlu0 %v1349, %s1362
    %v1364 = vpop.permute.xlu0 %1363
    %v1369 = vadd.f32 %v1322, %v1352
    %v1370 = vadd.f32 %v1325, %v1356
    %v1371 = vadd.f32 %v1328, %v1360
    %v1372 = vadd.f32 %v1331, %v1364
    %v1373 = vadd.f32 %v1334, %v1352
    %v1374 = vadd.f32 %v1337, %v1356
    %v1375 = vadd.f32 %v1340, %v1360
    %v1376 = vadd.f32 %v1343, %v1364
    %v1377 = vxor.u32 %v1369, 2147483648
    %v1378 = vxor.u32 %v1370, 2147483648
    %v1379 = vxor.u32 %v1371, 2147483648
    %v1380 = vxor.u32 %v1372, 2147483648
    %v1381 = vxor.u32 %v1373, 2147483648
    %v1382 = vxor.u32 %v1374, 2147483648
    %v1383 = vxor.u32 %v1375, 2147483648
    %v1384 = vxor.u32 %v1376, 2147483648
    %v1385 = vmul.f32 %v1377, 1.442695
    %v1386 = vpow.pop %v1385
    %v1387 = vmul.f32 %v1378, 1.442695
    %v1388 = vpow.pop %v1387
    %v1389 = vmul.f32 %v1379, 1.442695
    %v1390 = vpow.pop %v1389
    %v1391 = vmul.f32 %v1380, 1.442695
    %v1392 = vpow.pop %v1391
    %v1393 = vmul.f32 %v1381, 1.442695
    %v1394 = vpow.pop %v1393
    %v1395 = vmul.f32 %v1382, 1.442695
    %v1396 = vpow.pop %v1395
    %v1397 = vmul.f32 %v1383, 1.442695
    %v1398 = vpow.pop %v1397
    %v1399 = vmul.f32 %v1384, 1.442695
    %v1400 = vpow.pop %v1399
    %v1401 = vadd.f32 %v1386, 1.0
    %v1402 = vadd.f32 %v1388, 1.0
    %v1403 = vadd.f32 %v1390, 1.0
    %v1404 = vadd.f32 %v1392, 1.0
    %v1405 = vadd.f32 %v1394, 1.0
    %v1406 = vadd.f32 %v1396, 1.0
    %v1407 = vadd.f32 %v1398, 1.0
    %v1408 = vadd.f32 %v1400, 1.0
    %v1409 = vrcp.pop %v1401
    %v1410 = vmul.f32 1.0, %v1409
    %v1411 = vrcp.pop %v1402
    %v1412 = vmul.f32 1.0, %v1411
    %v1413 = vrcp.pop %v1403
    %v1414 = vmul.f32 1.0, %v1413
    %v1415 = vrcp.pop %v1404
    %v1416 = vmul.f32 1.0, %v1415
    %v1417 = vrcp.pop %v1405
    %v1418 = vmul.f32 1.0, %v1417
    %v1419 = vrcp.pop %v1406
    %v1420 = vmul.f32 1.0, %v1419
    %v1421 = vrcp.pop %v1407
    %v1422 = vmul.f32 1.0, %v1421
    %v1423 = vrcp.pop %v1408
    %v1424 = vmul.f32 1.0, %v1423
    %v1425 = vld [vmem:[%s5] sm:$0xff]
    %v1426 = vld [vmem:[%s5 + $0x8] sm:$0xff]
    %v1427 = vld [vmem:[%s5 + $0x10] sm:$0xff]
    %v1428 = vld [vmem:[%s5 + $0x18] sm:$0xff]
    %1430 = vset.pattern.permute.xlu0 0
    %1431 = vperm.xlu0 %1430, %v1425
    %v1432 = vpop.permute.xlu0 %1431
    %1435 = vset.pattern.permute.xlu0 0
    %1436 = vperm.xlu0 %1435, %v1426
    %v1437 = vpop.permute.xlu0 %1436
    %1440 = vset.pattern.permute.xlu0 0
    %1441 = vperm.xlu0 %1440, %v1427
    %v1442 = vpop.permute.xlu0 %1441
    %1445 = vset.pattern.permute.xlu0 0
    %1446 = vperm.xlu0 %1445, %v1428
    %v1447 = vpop.permute.xlu0 %1446
    %v1449 = vmul.f32 %v42, %v1432
    %v1450 = vmul.f32 %v43, %v1432
    %v1451 = vmul.f32 %v44, %v1437
    %v1452 = vmul.f32 %v45, %v1437
    %v1453 = vmul.f32 %v46, %v1442
    %v1454 = vmul.f32 %v47, %v1442
    %v1455 = vmul.f32 %v48, %v1447
    %v1456 = vmul.f32 %v49, %v1447
    %v1457 = vmul.f32 %v50, %v1432
    %v1458 = vmul.f32 %v51, %v1432
    %v1459 = vmul.f32 %v52, %v1437
    %v1460 = vmul.f32 %v53, %v1437
    %v1461 = vmul.f32 %v54, %v1442
    %v1462 = vmul.f32 %v55, %v1442
    %v1463 = vmul.f32 %v56, %v1447
    %v1464 = vmul.f32 %v57, %v1447
    %v1465 = vadd.f32 %v1449, %v1451
    %v1466 = vadd.f32 %v1465, %v1453
    %v1467 = vadd.f32 %v1466, %v1455
    %v1468 = vrot.slane %v1467, 4
    %v1469 = vadd.f32 %v1467, %v1468
    %v1470 = vrot.slane %v1469, 2
    %v1471 = vadd.f32 %v1469, %v1470
    %v1472 = vrot.slane %v1471, 1
    %v1473 = vadd.f32 %v1471, %v1472
    %v1474 = vadd.f32 %v1450, %v1452
    %v1475 = vadd.f32 %v1474, %v1454
    %v1476 = vadd.f32 %v1475, %v1456
    %v1477 = vrot.slane %v1476, 4
    %v1478 = vadd.f32 %v1476, %v1477
    %v1479 = vrot.slane %v1478, 2
    %v1480 = vadd.f32 %v1478, %v1479
    %v1481 = vrot.slane %v1480, 1
    %v1482 = vadd.f32 %v1480, %v1481
    %v1483 = vadd.f32 %v1457, %v1459
    %v1484 = vadd.f32 %v1483, %v1461
    %v1485 = vadd.f32 %v1484, %v1463
    %v1486 = vrot.slane %v1485, 4
    %v1487 = vadd.f32 %v1485, %v1486
    %v1488 = vrot.slane %v1487, 2
    %v1489 = vadd.f32 %v1487, %v1488
    %v1490 = vrot.slane %v1489, 1
    %v1491 = vadd.f32 %v1489, %v1490
    %v1492 = vadd.f32 %v1458, %v1460
    %v1493 = vadd.f32 %v1492, %v1462
    %v1494 = vadd.f32 %v1493, %v1464
    %v1495 = vrot.slane %v1494, 4
    %v1496 = vadd.f32 %v1494, %v1495
    %v1497 = vrot.slane %v1496, 2
    %v1498 = vadd.f32 %v1496, %v1497
    %v1499 = vrot.slane %v1498, 1
    %v1500 = vadd.f32 %v1498, %v1499
    %s1501 = sld [smem:[#allocation2]]
    %v1502 = vstv %s1501
    %v1503 = vadd.f32 %v1473, %v1502
    %v1504 = vadd.f32 %v1482, %v1502
    %v1505 = vadd.f32 %v1491, %v1502
    %v1506 = vadd.f32 %v1500, %v1502
    %v1507 = vxor.u32 %v1503, 2147483648
    %v1508 = vxor.u32 %v1504, 2147483648
    %v1509 = vxor.u32 %v1505, 2147483648
    %v1510 = vxor.u32 %v1506, 2147483648
    %v1511 = vmul.f32 %v1507, 1.442695
    %v1512 = vpow.pop %v1511
    %v1513 = vmul.f32 %v1508, 1.442695
    %v1514 = vpow.pop %v1513
    %v1515 = vmul.f32 %v1509, 1.442695
    %v1516 = vpow.pop %v1515
    %v1517 = vmul.f32 %v1510, 1.442695
    %v1518 = vpow.pop %v1517
    %v1519 = vadd.f32 %v1512, 1.0
    %v1520 = vadd.f32 %v1514, 1.0
    %v1521 = vadd.f32 %v1516, 1.0
    %v1522 = vadd.f32 %v1518, 1.0
    %v1523 = vrcp.pop %v1519
    %v1524 = vmul.f32 1.0, %v1523
    %v1525 = vrcp.pop %v1520
    %v1526 = vmul.f32 1.0, %v1525
    %v1527 = vrcp.pop %v1521
    %v1528 = vmul.f32 1.0, %v1527
    %v1529 = vrcp.pop %v1522
    %v1530 = vmul.f32 1.0, %v1529
    %1532 = vset.pattern.permute.xlu0 0
    %1533 = vperm.xlu0 %1532, %v1410
    %v1534 = vpop.permute.xlu0 %1533
    %1537 = vset.pattern.permute.xlu0 0
    %1538 = vperm.xlu0 %1537, %v1412
    %v1539 = vpop.permute.xlu0 %1538
    %1542 = vset.pattern.permute.xlu0 0
    %1543 = vperm.xlu0 %1542, %v1414
    %v1544 = vpop.permute.xlu0 %1543
    %1547 = vset.pattern.permute.xlu0 0
    %1548 = vperm.xlu0 %1547, %v1416
    %v1549 = vpop.permute.xlu0 %1548
    %1552 = vset.pattern.permute.xlu0 0
    %1553 = vperm.xlu0 %1552, %v1418
    %v1554 = vpop.permute.xlu0 %1553
    %1557 = vset.pattern.permute.xlu0 0
    %1558 = vperm.xlu0 %1557, %v1420
    %v1559 = vpop.permute.xlu0 %1558
    %1562 = vset.pattern.permute.xlu0 0
    %1563 = vperm.xlu0 %1562, %v1422
    %v1564 = vpop.permute.xlu0 %1563
    %1567 = vset.pattern.permute.xlu0 0
    %1568 = vperm.xlu0 %1567, %v1424
    %v1569 = vpop.permute.xlu0 %1568
    %v1571 = vadd.f32 %v1534, %v1524
    %v1572 = vadd.f32 %v1534, %v1526
    %v1573 = vadd.f32 %v1539, %v1524
    %v1574 = vadd.f32 %v1539, %v1526
    %v1575 = vadd.f32 %v1544, %v1524
    %v1576 = vadd.f32 %v1544, %v1526
    %v1577 = vadd.f32 %v1549, %v1524
    %v1578 = vadd.f32 %v1549, %v1526
    %v1579 = vadd.f32 %v1554, %v1528
    %v1580 = vadd.f32 %v1554, %v1530
    %v1581 = vadd.f32 %v1559, %v1528
    %v1582 = vadd.f32 %v1559, %v1530
    %v1583 = vadd.f32 %v1564, %v1528
    %v1584 = vadd.f32 %v1564, %v1530
    %v1585 = vadd.f32 %v1569, %v1528
    %v1586 = vadd.f32 %v1569, %v1530
    %v1587 = vmul.f32 %v42, %v1571
    %v1588 = vmul.f32 %v43, %v1572
    %v1589 = vmul.f32 %v44, %v1573
    %v1590 = vmul.f32 %v45, %v1574
    %v1591 = vmul.f32 %v46, %v1575
    %v1592 = vmul.f32 %v47, %v1576
    %v1593 = vmul.f32 %v48, %v1577
    %v1594 = vmul.f32 %v49, %v1578
    %v1595 = vmul.f32 %v50, %v1579
    %v1596 = vmul.f32 %v51, %v1580
    %v1597 = vmul.f32 %v52, %v1581
    %v1598 = vmul.f32 %v53, %v1582
    %v1599 = vmul.f32 %v54, %v1583
    %v1600 = vmul.f32 %v55, %v1584
    %v1601 = vmul.f32 %v56, %v1585
    %v1602 = vmul.f32 %v57, %v1586
    %1603 = vst [vmem:[#allocation6] sm:$0xff] %v1587
    %1604 = vst [vmem:[#allocation6 + $0x8] sm:$0xff] %v1588
    %1605 = vst [vmem:[#allocation6 + $0x10] sm:$0xff] %v1589
    %1606 = vst [vmem:[#allocation6 + $0x18] sm:$0xff] %v1590
    %1607 = vst [vmem:[#allocation6 + $0x20] sm:$0xff] %v1591
    %1608 = vst [vmem:[#allocation6 + $0x28] sm:$0xff] %v1592
    %1609 = vst [vmem:[#allocation6 + $0x30] sm:$0xff] %v1593
    %1610 = vst [vmem:[#allocation6 + $0x38] sm:$0xff] %v1594
    %1611 = vst [vmem:[#allocation6 + $0x40] sm:$0xff] %v1595
    %1612 = vst [vmem:[#allocation6 + $0x48] sm:$0xff] %v1596
    %1613 = vst [vmem:[#allocation6 + $0x50] sm:$0xff] %v1597
    %1614 = vst [vmem:[#allocation6 + $0x58] sm:$0xff] %v1598
    %1615 = vst [vmem:[#allocation6 + $0x60] sm:$0xff] %v1599
    %1616 = vst [vmem:[#allocation6 + $0x68] sm:$0xff] %v1600
    %1617 = vst [vmem:[#allocation6 + $0x70] sm:$0xff] %v1601
    %1618 = vst [vmem:[#allocation6 + $0x78] sm:$0xff] %v1602
    // Predicated region
    $region34: #{tpu_custom_call.1} parent=1 // pred_check
      _
    $region35: #{tpu_custom_call.1} parent=1 // pred_check_branch
      %1620 = sbr.rel (0) target = $region37
    $region36: #{tpu_custom_call.1} parent=1 // pred_region
      %s1622 = ssub.s32 2048, 2048
      %1623 = vsyncadd [#allocation5], %s1622
      %s1624 = sshll.u32 [#allocation6], 4
      %s1625 = int_to_ptr.vmem [resolvable:$true] %s1624
      %1630 = dma.vmem_to_hbm [thread:$0]  %s1625, 2048, %s7, [#allocation5], 256, 256, 16
    $region37: #{tpu_custom_call.1} parent=1 // pred_fallthru
      _
    // Predicated region
    $region38: #{tpu_custom_call.1} parent=1 // pred_check
      _
    $region39: #{tpu_custom_call.1} parent=1 // pred_check_branch
      %1632 = sbr.rel (0) target = $region41
    $region40: #{tpu_custom_call.1} parent=1 // pred_region
      %1633 = dma.done [#allocation5], 2048
    $region41: #{tpu_custom_call.1} parent=1 // pred_fallthru
      _
    %1634 = vsyncpa [#allocation4], 1
    %1635 = vsyncpa [#allocation5], 1

</llo_original>
